<compile_context>
chip_gen: v7x
topology: tpu7x:2x2x1
jax: 0.10.0
libtpu: 0.0.40
codegen_flags: <defaults>
</compile_context>

<pallas_src>
import functools

import jax
import jax.numpy as jnp
from jax.experimental import pallas as pl
from jax.experimental.pallas import tpu as pltpu


def _contrastive_loss_kernel(scores_ref, dcol_ref, drow_ref, *out_refs,
                             margin, last_rows, ragged, max_violation):
    i = pl.program_id(0)

    s = scores_ref[...].astype(jnp.float32)            # (tm, n)
    tm, n = s.shape
    d_col = dcol_ref[...].astype(jnp.float32)          # (tm, 1)  diag[row]
    d_row = drow_ref[...].astype(jnp.float32)          # (1, n)   diag[col]

    t = s + margin                                      # shared by both costs
    cost_s = jnp.maximum(t - d_col, 0.0)                # caption-retrieval hinge
    cost_im = jnp.maximum(t - d_row, 0.0)               # image-retrieval hinge

    def emit(mask_rows):
        if max_violation:
            rowmax_ref, colmax_ref = out_refs
            # Off-diagonal mask: global_row != col  <=>  (col - row_local) != i*tm
            row_l = jax.lax.broadcasted_iota(jnp.int32, (tm, n), 0)
            col_l = jax.lax.broadcasted_iota(jnp.int32, (tm, n), 1)
            keep = (col_l - row_l) != i * tm
            if mask_rows:
                keep = jnp.logical_and(keep, row_l < last_rows)
            cs = jnp.where(keep, cost_s, 0.0)
            ci = jnp.where(keep, cost_im, 0.0)
            # Hardest negative per row (complete within this row tile).
            rowmax_ref[...] = jnp.max(cs, axis=1, keepdims=True)          # (tm, 1)
            # Per-tile column max; cross-tile max happens in the wrapper.
            colmax_ref[...] = jnp.max(ci, axis=0,
                                      keepdims=True).reshape(1, 1, n)     # (1, 1, n)
        else:
            (colsum_ref,) = out_refs
            # No diagonal mask: the wrapper subtracts 2*N*max(margin, 0).
            tot = cost_s + cost_im
            if mask_rows:
                row_l = jax.lax.broadcasted_iota(jnp.int32, (tm, n), 0)
                tot = jnp.where(row_l < last_rows, tot, 0.0)
            colsum_ref[...] = jnp.sum(tot, axis=0,
                                      keepdims=True).reshape(1, 1, n)     # (1, 1, n)

    if ragged:
        nt = pl.num_programs(0)

        @pl.when(i < nt - 1)
        def _():
            emit(False)

        @pl.when(i == nt - 1)
        def _():
            emit(True)
    else:
        emit(False)


def contrastive_loss(scores, margin=0.0, max_violation=False, block_rows=1024):
    """Pallas implementation of ContrastiveLoss.forward(scores)."""
    n = scores.shape[0]
    assert scores.shape == (n, n), "scores must be square [N, N]"

    # Diagonal extracted once in the wrapper (O(N)); kept in native dtype.
    diag = jnp.diagonal(scores)
    diag_col = diag.reshape(n, 1)
    diag_row = diag.reshape(1, n)

    itemsize = jnp.dtype(scores.dtype).itemsize

    # Size the double-buffered (tm, N) input slab from device VMEM capacity;
    # cap at 32 MiB so it also fits v7x's 64 MiB-per-TensorCore VMEM.
    try:
        vmem_cap = int(pltpu.get_tpu_info().vmem_capacity_bytes)
    except Exception:  # pragma: no cover - conservative fallback (v7x-sized)
        vmem_cap = 64 * 1024 * 1024
    input_budget = min(vmem_cap // 3, 32 * 1024 * 1024)

    budget_rows = max(8, input_budget // (2 * n * itemsize))
    tm = max(8, (min(block_rows, budget_rows) // 8) * 8)
    if tm >= n:
        if n >= 128:
            # Force >= 2 row tiles so the "parallel" axis can use both
            # TensorCores on v7x (no effect on single-TC v5e/v6e).
            tm = max(8, ((-(-n // 2) + 7) // 8) * 8)
        else:
            tm = n  # single full-extent tile (block == full array dims)
    num_tiles = -(-n // tm)
    last_rows = n - (num_tiles - 1) * tm
    ragged = (last_rows != tm)

    tile_bytes = 2 * tm * n * itemsize  # double-buffered scores tile
    vmem_limit_bytes = int(min(vmem_cap * 3 // 4, tile_bytes + 8 * 1024 * 1024))
    vmem_limit_bytes = max(vmem_limit_bytes, 16 * 1024 * 1024)

    kernel = functools.partial(
        _contrastive_loss_kernel,
        margin=float(margin),
        last_rows=int(last_rows),
        ragged=bool(ragged),
        max_violation=bool(max_violation),
    )

    in_specs = [
        pl.BlockSpec((tm, n), lambda i: (i, 0)),       # scores row tile
        pl.BlockSpec((tm, 1), lambda i: (i, 0)),       # diag for these rows
        pl.BlockSpec((1, n), lambda i: (0, 0)),        # full diag as a row
    ]

    if max_violation:
        out_shape = (
            jax.ShapeDtypeStruct((n, 1), jnp.float32),            # row maxes
            jax.ShapeDtypeStruct((num_tiles, 1, n), jnp.float32), # col maxes / tile
        )
        out_specs = (
            pl.BlockSpec((tm, 1), lambda i: (i, 0)),
            pl.BlockSpec((1, 1, n), lambda i: (i, 0, 0)),
        )
    else:
        out_shape = (jax.ShapeDtypeStruct((num_tiles, 1, n), jnp.float32),)
        out_specs = (pl.BlockSpec((1, 1, n), lambda i: (i, 0, 0)),)

    results = pl.pallas_call(
        kernel,
        out_shape=out_shape,
        grid_spec=pltpu.PrefetchScalarGridSpec(
            num_scalar_prefetch=0,
            grid=(num_tiles,),
            in_specs=in_specs,
            out_specs=out_specs,
        ),
        compiler_params=pltpu.CompilerParams(
            dimension_semantics=("parallel",),
            vmem_limit_bytes=vmem_limit_bytes),
    )(scores, diag_col, diag_row)

    if max_violation:
        rowmax, colmax = results
        return jnp.sum(rowmax) + jnp.sum(jnp.max(colmax, axis=0))
    else:
        (colsum,) = results
        # Each diagonal entry contributes exactly max(margin, 0) to each cost.
        return jnp.sum(colsum) - 2.0 * n * max(float(margin), 0.0)


def _reference_loss(scores, margin=0.0, max_violation=False):
    """Pure-JAX reference mirroring the PyTorch code."""
    s = scores.astype(jnp.float32)
    diag = jnp.diag(s)
    cost_s = jnp.maximum(margin + s - diag[:, None], 0.0)
    cost_im = jnp.maximum(margin + s - diag[None, :], 0.0)
    eye = jnp.eye(s.shape[0], dtype=bool)
    cost_s = jnp.where(eye, 0.0, cost_s)
    cost_im = jnp.where(eye, 0.0, cost_im)
    if max_violation:
        cost_s = cost_s.max(axis=1)
        cost_im = cost_im.max(axis=0)
    return cost_s.sum() + cost_im.sum()


if __name__ == "__main__":
    k1, k2, k3 = jax.random.split(jax.random.PRNGKey(0), 3)

    # Case 1: tiny batch -> single full-extent tile.
    scores_small = jax.random.normal(k1, (8, 8), dtype=jnp.float32)
    # Case 2: larger, non-multiple-of-tile batch, f32; small block_rows forces
    # a genuinely multi-tile + ragged-last-tile path.
    scores_big = jax.random.normal(k2, (200, 200), dtype=jnp.float32)
    # Case 3: bf16 input (native-dtype streaming path) + >=2-tile megacore split.
    scores_bf16 = jax.random.normal(k3, (136, 136), dtype=jnp.float32).astype(jnp.bfloat16)

    cases = (
        (scores_small, 1024, 0.2),
        (scores_big, 64, 0.2),
        (scores_big, 1024, 0.0),
        (scores_bf16, 1024, 0.2),
    )
    for scores, br, margin in cases:
        for max_violation in (False, True):
            got = jax.block_until_ready(
                contrastive_loss(scores, margin=margin,
                                 max_violation=max_violation, block_rows=br))
            want = _reference_loss(scores, margin=margin,
                                   max_violation=max_violation)
            assert jnp.allclose(got, want, rtol=1e-4, atol=1e-2), (
                scores.shape, scores.dtype, max_violation, br, got, want)

    print("KERNEL_OK")
</pallas_src>

<mosaic_0001>
module attributes {stable_mosaic.version = 11 : i64} {
  func.func @_contrastive_loss_kernel(%arg0: i32, %arg1: memref<8x8xf32, #tpu.memory_space<vmem>>, %arg2: memref<8x1xf32, #tpu.memory_space<vmem>>, %arg3: memref<1x8xf32, #tpu.memory_space<vmem>>, %arg4: memref<1x1x8xf32, #tpu.memory_space<vmem>>) attributes {dimension_semantics = [#tpu.dimension_semantics<parallel>], iteration_bounds = array<i64: 1>, scalar_prefetch = 0 : i64, scratch_operands = 0 : i64, tpu.core_type = #tpu.core_type<tc>, window_params = [{transform_indices = @transform_0, window_bounds = array<i64: 8, 8>}, {transform_indices = @transform_1, window_bounds = array<i64: 8, 1>}, {pipeline_mode = #tpu.pipeline_mode<synchronous>, transform_indices = @transform_2, window_bounds = array<i64: 1, 8>}, {transform_indices = @transform_3, window_bounds = array<i64: 1, 1, 8>}]} {
    %c0 = arith.constant 0 : index
    %c0_0 = arith.constant 0 : index
    %0 = vector.load %arg1[%c0, %c0_0] : memref<8x8xf32, #tpu.memory_space<vmem>>, vector<8x8xf32>
    %c0_1 = arith.constant 0 : index
    %c0_2 = arith.constant 0 : index
    %1 = vector.load %arg2[%c0_1, %c0_2] : memref<8x1xf32, #tpu.memory_space<vmem>>, vector<8x1xf32>
    %c0_3 = arith.constant 0 : index
    %c0_4 = arith.constant 0 : index
    %2 = vector.load %arg3[%c0_3, %c0_4] : memref<1x8xf32, #tpu.memory_space<vmem>>, vector<1x8xf32>
    %cst = arith.constant 2.000000e-01 : f32
    %3 = vector.broadcast %cst : f32 to vector<8x8xf32>
    %4 = arith.addf %0, %3 : vector<8x8xf32>
    %5 = vector.broadcast %1 : vector<8x1xf32> to vector<8x8xf32>
    %6 = arith.subf %4, %5 : vector<8x8xf32>
    %cst_5 = arith.constant 0.000000e+00 : f32
    %7 = vector.broadcast %cst_5 : f32 to vector<8x8xf32>
    %8 = arith.maximumf %6, %7 : vector<8x8xf32>
    %9 = vector.broadcast %2 : vector<1x8xf32> to vector<8x8xf32>
    %10 = arith.subf %4, %9 : vector<8x8xf32>
    %cst_6 = arith.constant 0.000000e+00 : f32
    %11 = vector.broadcast %cst_6 : f32 to vector<8x8xf32>
    %12 = arith.maximumf %10, %11 : vector<8x8xf32>
    %13 = arith.addf %8, %12 : vector<8x8xf32>
    %cst_7 = arith.constant dense<0.000000e+00> : vector<8xf32>
    %14 = vector.multi_reduction <add>, %13, %cst_7 [0] : vector<8x8xf32> to vector<8xf32>
    %15 = vector.shape_cast %14 : vector<8xf32> to vector<1x8xf32>
    %16 = vector.shape_cast %15 : vector<1x8xf32> to vector<1x1x8xf32>
    %c0_8 = arith.constant 0 : index
    %c0_9 = arith.constant 0 : index
    %c0_10 = arith.constant 0 : index
    %17 = vector.load %arg4[%c0_8, %c0_9, %c0_10] : memref<1x1x8xf32, #tpu.memory_space<vmem>>, vector<1x1x8xf32>
    tpu.vector_store %arg4[%c0_8, %c0_9, %c0_10], %16 {strides = array<i32>} : memref<1x1x8xf32, #tpu.memory_space<vmem>>, vector<1x1x8xf32>,
    return
  }
  func.func @transform_0(%arg0: i32) -> (i32, i32) {
    %c0_i32 = arith.constant 0 : i32
    %c0_i32_0 = arith.constant 0 : i32
    return %arg0, %c0_i32 : i32, i32
  }
  func.func @transform_1(%arg0: i32) -> (i32, i32) {
    %c0_i32 = arith.constant 0 : i32
    %c0_i32_0 = arith.constant 0 : i32
    return %arg0, %c0_i32 : i32, i32
  }
  func.func @transform_2(%arg0: i32) -> (i32, i32) {
    %c0_i32 = arith.constant 0 : i32
    %c0_i32_0 = arith.constant 0 : i32
    %c0_i32_1 = arith.constant 0 : i32
    return %c0_i32, %c0_i32_0 : i32, i32
  }
  func.func @transform_3(%arg0: i32) -> (i32, i32, i32) {
    %c0_i32 = arith.constant 0 : i32
    %c0_i32_0 = arith.constant 0 : i32
    %c0_i32_1 = arith.constant 0 : i32
    return %arg0, %c0_i32, %c0_i32_0 : i32, i32, i32
  }
}

</mosaic_0001>

<llo_original>
// kernel: tpu_custom_call.1
$region0: #{tpu_custom_call.1}
  #allocation0 [shape = 'u32[]', space=smem, size = 0x4, offset = 0x4, fixed_abs, tag = 'smem constant byte address 0x4 - core index']
  #allocation1 [shape = 'u32[144,128]{1,0:T(1,128)}', space=vmem, size = 0x12000, scoped, tag = 'internal scratch']
  %s0 = inlined_call_operand.vmem [shape: f32[8,8], index: 0, kind: input, shape index: {}]
  %s1 = inlined_call_operand.vmem [shape: f32[8,1], index: 1, kind: input, shape index: {}]
  %s2 = inlined_call_operand.vmem [shape: f32[1,8], index: 2, kind: input, shape index: {}]
  %s3 = inlined_call_operand.hbm [shape: f32[1,1,8], index: 3, kind: output, shape index: {}]
  %s4 = sld [smem:[#allocation0]]
  $region22: #{tpu_custom_call.1} parent=0
    _
  %s6 = ssub.s32 1, %s4
  %s7 = scalar_select 0, %s6, %s4
  $region1: #{tpu_custom_call.1} parent=0
    #allocation2 [shape = 'u8[512]{0}', space=vmem, size = 0x400, scoped, tag = 'output window, operand 0, single buffered']
    #allocation3 [shape = 's32[1]{0}', space=sflag, size = 0x4, scoped, tag = 'scoped memory for tpu_custom_call.1']
    %8 = vsyncpa [#allocation3], 0
    // Predicated region
    $region2: #{tpu_custom_call.1} parent=1 // pred_check
      _
    $region3: #{tpu_custom_call.1} parent=1 // pred_check_branch
      %10 = sbr.rel (0) target = $region5
    $region4: #{tpu_custom_call.1} parent=1 // pred_region
      _
    $region5: #{tpu_custom_call.1} parent=1 // pred_fallthru
      _
    // Predicated region
    $region6: #{tpu_custom_call.1} parent=1 // pred_check
      _
    $region7: #{tpu_custom_call.1} parent=1 // pred_check_branch
      %12 = sbr.rel (0) target = $region9
    $region8: #{tpu_custom_call.1} parent=1 // pred_region
      _
    $region9: #{tpu_custom_call.1} parent=1 // pred_fallthru
      _
    // Predicated region
    $region10: #{tpu_custom_call.1} parent=1 // pred_check
      _
    $region11: #{tpu_custom_call.1} parent=1 // pred_check_branch
      %14 = sbr.rel (0) target = $region13
    $region12: #{tpu_custom_call.1} parent=1 // pred_region
      _
    $region13: #{tpu_custom_call.1} parent=1 // pred_fallthru
      _
    %v15 = vld [vmem:[%s0] sm:$0xff]
    %v16 = vld [vmem:[%s1] sm:$0xff]
    %v17 = vld [vmem:[%s2] sm:$0x1]
    %v18 = vadd.f32 %v15, 0.2
    %20 = vset.pattern.permute.xlu0 0
    %21 = vperm.xlu0 %20, %v16
    %v22 = vpop.permute.xlu0 %21
    %v24 = vsub.f32 %v18, %v22
    %v25 = vmax.f32 %v24, 0.0
    %v27 = vlaneseq
    %v28 = vshrl.u32 %v27, 7
    %v29 = vsub.s32 0, %v28
    %v30 = vrot.slane %v17, %v29
    %v32 = vsub.f32 %v18, %v30
    %v33 = vmax.f32 %v32, 0.0
    %v34 = vadd.f32 %v25, %v33
    %vm35 = vcmask 64512
    %v36 = vsel %vm35, %v34, 0.0
    %v37 = vrot.slane %v36, 4
    %v38 = vadd.f32 %v36, %v37
    %v39 = vrot.slane %v38, 2
    %v40 = vadd.f32 %v38, %v39
    %v41 = vrot.slane %v40, 1
    %v42 = vadd.f32 %v40, %v41
    %vm43 = vcmask 57344
    %44 = vst.msk [vmem:[#allocation2] sm:$0x1] %vm43, %v42
    // Predicated region
    $region14: #{tpu_custom_call.1} parent=1 // pred_check
      _
    $region15: #{tpu_custom_call.1} parent=1 // pred_check_branch
      %46 = sbr.rel (0) target = $region17
    $region16: #{tpu_custom_call.1} parent=1 // pred_region
      %s48 = ssub.s32 16, 16
      %49 = vsyncadd [#allocation3], %s48
      %s51 = sshll.u32 [#allocation2], 4
      %s52 = int_to_ptr.vmem [resolvable:$true] %s51
      %54 = dma.vmem_to_hbm [thread:$0]  %s52, 16, %s3, [#allocation3]
    $region17: #{tpu_custom_call.1} parent=1 // pred_fallthru
      _
    // Predicated region
    $region18: #{tpu_custom_call.1} parent=1 // pred_check
      _
    $region19: #{tpu_custom_call.1} parent=1 // pred_check_branch
      %56 = sbr.rel (0) target = $region21
    $region20: #{tpu_custom_call.1} parent=1 // pred_region
      %57 = dma.done [#allocation3], 16
    $region21: #{tpu_custom_call.1} parent=1 // pred_fallthru
      _
    %58 = vsyncpa [#allocation3], 1

</llo_original>
